<compile_context>
chip_gen: v7x
topology: tpu7x:2x2x1
jax: 0.10.0
libtpu: 0.0.40
codegen_flags: <defaults>
</compile_context>

<pallas_src>
import functools

import jax
import jax.numpy as jnp
from jax import lax
from jax.experimental import pallas as pl
from jax.experimental.pallas import tpu as pltpu

LANE = 128                      # every channel axis is padded to this lane width
MXU_DTYPE = jnp.bfloat16        # MXU operand dtype (jnp.float32 => exact-f32 matmuls)
VMEM_LIMIT = 32 * 1024 * 1024   # explicit scoped-VMEM budget, safe on v5e/v6e/v7x


def _round_up(x, m):
    return (x + m - 1) // m * m


# ----------------------------------------------------------------------------
# Pallas kernels
# ----------------------------------------------------------------------------

def gemm_kernel(p_ref, w_ref, o_ref):
    """o = P @ W  (conv1 via a tiny im2col; Cout lane-padded -> dense stores)."""
    o_ref[...] = jnp.dot(p_ref[...].astype(w_ref.dtype), w_ref[...],
                         preferred_element_type=jnp.float32)


def resblock_kernel(x_ref, s1_ref, t1_ref, w1_ref, s2_ref, t2_ref,
                    w2_ref, wd_ref, asd_ref, ab_ref,
                    o_ref, hpad_ref, *,
                    hin, win, pad, stride, ksize, oh, ow, b):
    """One fully-fused ResidualBlock2dConv for one batch element.

    x_ref   : (Hp, Wp, Cpi)  spatially + channel padded input (f32)
    w1_ref  : (Cpi, Cpi)     1x1 conv weight        (MXU dtype, zero padded)
    w2_ref  : (K*K, Cpi, Cpo) per-tap main-conv weights
    wd_ref  : (K*K, Cpi, Cpo) per-tap downsample-conv weights
    asd_ref : (1, Cpo)       a * bn_d scale                       (f32)
    ab_ref  : (1, Cpo)       a * (bias_d * bn_d_scale + bn_d_shift)  (f32)
    o_ref   : (oh*ow, Cpo)   lane-dense output (f32)
    hpad_ref: (Hp, Wp, Cpi)  VMEM scratch for the zero-padded main branch.
    """
    cpi = x_ref.shape[-1]
    cpo = w2_ref.shape[-1]

    # ---- main branch, point-wise part: relu(bn2(conv1x1(relu(bn1(x))))) ----
    # (only valid on the interior: spatial padding must stay exactly zero)
    h = x_ref[pad:pad + hin, pad:pad + win, :].reshape(hin * win, cpi)
    h = jnp.maximum(h * s1_ref[...] + t1_ref[...], 0.0)
    h = jnp.dot(h.astype(w1_ref.dtype), w1_ref[...],
                preferred_element_type=jnp.float32)
    h = jnp.maximum(h * s2_ref[...] + t2_ref[...], 0.0)

    if pad > 0:
        hpad_ref[...] = jnp.zeros_like(hpad_ref)
    hpad_ref[pad:pad + hin, pad:pad + win, :] = h.reshape(hin, win, cpi)

    # ---- k4 stride-2 convs: accumulate over taps, no im2col materialisation --
    acc_m = jnp.zeros((oh * ow, cpo), jnp.float32)   # main branch
    acc_d = jnp.zeros((oh * ow, cpo), jnp.float32)   # downsample branch
    for ki in range(ksize):
        for kj in range(ksize):
            tap = ki * ksize + kj
            hw = hpad_ref[pl.ds(ki, oh, stride=stride),
                          pl.ds(kj, ow, stride=stride), :]
            xw = x_ref[pl.ds(ki, oh, stride=stride),
                       pl.ds(kj, ow, stride=stride), :]
            hw = hw.reshape(oh * ow, cpi).astype(w2_ref.dtype)
            xw = xw.reshape(oh * ow, cpi).astype(wd_ref.dtype)
            acc_m = acc_m + jnp.dot(hw, w2_ref[tap],
                                    preferred_element_type=jnp.float32)
            acc_d = acc_d + jnp.dot(xw, wd_ref[tap],
                                    preferred_element_type=jnp.float32)

    # out = a * bn_d(conv_d(x) + bias_d) + b * main
    #     = acc_d * (a*scale) + a*(bias*scale + shift) + b * acc_m
    o_ref[...] = acc_d * asd_ref[...] + ab_ref[...] + b * acc_m


# ----------------------------------------------------------------------------
# Pallas wrappers
# ----------------------------------------------------------------------------

def pallas_conv1_gemm(patches, w_mat, block_rows=1024):
    """patches [M, K] f32, w_mat [K, Cp] -> [M, Cp] f32 (lane-dense output)."""
    M, K = patches.shape
    Cp = w_mat.shape[1]
    if M <= block_rows:
        bm = _round_up(M, 8)          # block height: multiple of 8 (or full M)
    else:
        bm = block_rows               # block_rows is a multiple of 8
    mp = _round_up(M, bm)
    if mp != M:
        patches = jnp.pad(patches, ((0, mp - M), (0, 0)))
    out = pl.pallas_call(
        gemm_kernel,
        out_shape=jax.ShapeDtypeStruct((mp, Cp), jnp.float32),
        grid=(mp // bm,),
        in_specs=[pl.BlockSpec((bm, K), lambda i: (i, 0)),
                  pl.BlockSpec((K, Cp), lambda i: (0, 0))],
        out_specs=pl.BlockSpec((bm, Cp), lambda i: (i, 0)),
        compiler_params=pltpu.CompilerParams(
            dimension_semantics=("parallel",),
            vmem_limit_bytes=VMEM_LIMIT),
    )(patches, w_mat)
    return out[:M]


def pallas_resblock(xpad, s1, t1, w1, s2, t2, w2_taps, wd_taps, asd, ab,
                    *, hin, win, pad, stride, ksize, b):
    """xpad: [N, Hp, Wp, Cpi] spatially+channel padded input -> [N, OH, OW, Cpo]."""
    n, hp_, wp_, cpi = xpad.shape
    cpo = w2_taps.shape[-1]
    kk = ksize * ksize
    oh = (hin + 2 * pad - ksize) // stride + 1
    ow = (win + 2 * pad - ksize) // stride + 1
    kern = functools.partial(resblock_kernel, hin=hin, win=win, pad=pad,
                             stride=stride, ksize=ksize, oh=oh, ow=ow,
                             b=float(b))
    vin = pl.BlockSpec((1, cpi), lambda i: (0, 0))
    vout = pl.BlockSpec((1, cpo), lambda i: (0, 0))
    out = pl.pallas_call(
        kern,
        out_shape=jax.ShapeDtypeStruct((n, oh * ow, cpo), jnp.float32),
        grid=(n,),
        in_specs=[pl.BlockSpec((None, hp_, wp_, cpi), lambda i: (i, 0, 0, 0)),
                  vin, vin,
                  pl.BlockSpec((cpi, cpi), lambda i: (0, 0)),
                  vin, vin,
                  pl.BlockSpec((kk, cpi, cpo), lambda i: (0, 0, 0)),
                  pl.BlockSpec((kk, cpi, cpo), lambda i: (0, 0, 0)),
                  vout, vout],
        out_specs=pl.BlockSpec((None, oh * ow, cpo), lambda i: (i, 0, 0)),
        scratch_shapes=[pltpu.VMEM((hp_, wp_, cpi), jnp.float32)],
        compiler_params=pltpu.CompilerParams(
            dimension_semantics=("parallel",),        # batch across TCs (v7x)
            vmem_limit_bytes=VMEM_LIMIT),
    )(xpad, s1, t1, w1, s2, t2, w2_taps, wd_taps, asd, ab)
    return out.reshape(n, oh, ow, cpo)


# ----------------------------------------------------------------------------
# Glue: weight packing, BN folding, parameter construction
# ----------------------------------------------------------------------------

def im2col(x_nhwc, kh, kw, stride, padding):
    """Only used for conv1 (Cin=3, ~2x amplification).  [M, kh*kw*C]."""
    N, H, W, C = x_nhwc.shape
    xp = jnp.pad(x_nhwc, ((0, 0), (padding, padding), (padding, padding), (0, 0)))
    OH = (H + 2 * padding - kh) // stride + 1
    OW = (W + 2 * padding - kw) // stride + 1
    pieces = []
    for i in range(kh):
        for j in range(kw):
            pieces.append(xp[:, i:i + stride * (OH - 1) + 1:stride,
                             j:j + stride * (OW - 1) + 1:stride, :])
    P = jnp.stack(pieces, axis=3)                       # [N, OH, OW, kh*kw, C]
    return P.reshape(N * OH * OW, kh * kw * C), OH, OW


def bn_fold(gamma, beta, mean, var, eps=1e-5):
    scale = gamma / jnp.sqrt(var + eps)
    return scale, beta - mean * scale


def _pad_vec(v, cp):
    """Pad a per-channel vector with zeros to the lane-padded width, as [1, cp]."""
    return jnp.pad(v, (0, cp - v.shape[0])).reshape(1, cp)


def conv1x1_weight_mat(w_oihw, cp):
    cout, cin = w_oihw.shape[:2]
    w = w_oihw[:, :, 0, 0].T                            # [cin, cout]
    w = jnp.pad(w, ((0, cp - cin), (0, cp - cout)))
    return w.astype(MXU_DTYPE)


def conv_weight_taps(w_oihw, cp_in, cp_out):
    """[Cout, Cin, KH, KW] -> [KH*KW, cp_in, cp_out] per-tap matmul weights."""
    cout, cin, kh, kw = w_oihw.shape
    wt = jnp.transpose(w_oihw, (2, 3, 1, 0)).reshape(kh * kw, cin, cout)
    wt = jnp.pad(wt, ((0, 0), (0, cp_in - cin), (0, cp_out - cout)))
    return wt.astype(MXU_DTYPE)


def conv_weight_to_mat(w_oihw, cp_out):
    """[Cout, Cin, KH, KW] -> [KH*KW*Cin, cp_out] for the conv1 im2col GEMM."""
    cout, cin, kh, kw = w_oihw.shape
    w = jnp.transpose(w_oihw, (2, 3, 1, 0)).reshape(kh * kw * cin, cout)
    return jnp.pad(w, ((0, 0), (0, cp_out - cout))).astype(MXU_DTYPE)


def conv_init(key, cout, cin, kh, kw, bias):
    k1, k2 = jax.random.split(key)
    fan_in = cin * kh * kw
    w = jax.random.normal(k1, (cout, cin, kh, kw), jnp.float32) / jnp.sqrt(fan_in)
    b = (0.1 * jax.random.normal(k2, (cout,), jnp.float32)) if bias else None
    return w, b


def bn_init(key, c):
    k1, k2, k3, k4 = jax.random.split(key, 4)
    gamma = 1.0 + 0.1 * jax.random.normal(k1, (c,), jnp.float32)
    beta = 0.1 * jax.random.normal(k2, (c,), jnp.float32)
    mean = 0.1 * jax.random.normal(k3, (c,), jnp.float32)
    var = 1.0 + 0.2 * jnp.abs(jax.random.normal(k4, (c,), jnp.float32))
    return gamma, beta, mean, var


def make_resblock_params(key, cin, cout, k):
    keys = jax.random.split(key, 6)
    w1x1, _ = conv_init(keys[0], cin, cin, 1, 1, bias=False)
    w2, _ = conv_init(keys[1], cout, cin, k, k, bias=False)
    wd, bd = conv_init(keys[2], cout, cin, k, k, bias=True)   # downsample conv has bias
    return dict(w1x1=w1x1, w2=w2, wd=wd, bd=bd,
                bn1=bn_init(keys[3], cin),
                bn2=bn_init(keys[4], cin),
                bn_d=bn_init(keys[5], cout))


def make_params(key, image_channels, dim):
    keys = jax.random.split(key, 5)
    conv1_w, _ = conv_init(keys[0], dim, image_channels, 3, 3, bias=False)
    cfg = [(dim, 2 * dim), (2 * dim, 3 * dim), (3 * dim, 4 * dim), (4 * dim, 5 * dim)]
    resblocks = [make_resblock_params(k, ci, co, 4) for k, (ci, co) in zip(keys[1:], cfg)]
    return dict(conv1_w=conv1_w, resblocks=resblocks)


# ----------------------------------------------------------------------------
# Forward pass (Pallas path)
# ----------------------------------------------------------------------------

def resblock_forward_pallas(x_nhwc, p, cp_in, cp_out, k, stride, pad, a, b):
    n, h_, w_, _ = x_nhwc.shape
    s1, t1 = bn_fold(*p['bn1'])
    s2, t2 = bn_fold(*p['bn2'])
    sd, td = bn_fold(*p['bn_d'])
    # Fold downsample bias + BN + the `a` prefactor into one scale/shift (f32).
    asd = a * sd
    ab = a * (p['bd'] * sd + td)
    xpad = jnp.pad(x_nhwc, ((0, 0), (pad, pad), (pad, pad), (0, 0)))
    return pallas_resblock(
        xpad,
        _pad_vec(s1, cp_in), _pad_vec(t1, cp_in),
        conv1x1_weight_mat(p['w1x1'], cp_in),
        _pad_vec(s2, cp_in), _pad_vec(t2, cp_in),
        conv_weight_taps(p['w2'], cp_in, cp_out),
        conv_weight_taps(p['wd'], cp_in, cp_out),
        _pad_vec(asd, cp_out), _pad_vec(ab, cp_out),
        hin=h_, win=w_, pad=pad, stride=stride, ksize=k, b=b)


def feature_extractor_pallas(x_nchw, params, dim, a=2.0, b=0.3):
    x = jnp.transpose(x_nchw, (0, 2, 3, 1))              # NCHW -> NHWC
    n = x.shape[0]

    # conv1: 3x3, s2, p1, no bias.  Cin is tiny (3), so a small JAX im2col
    # (~2x amplification) + one lane-dense Pallas GEMM is used here; the k=4
    # residual blocks never materialise im2col.
    cp1 = _round_up(dim, LANE)
    patches, oh, ow = im2col(x, 3, 3, 2, 1)
    h = pallas_conv1_gemm(patches, conv_weight_to_mat(params['conv1_w'], cp1))
    h = h.reshape(n, oh, ow, cp1)

    # resblocks (img_size == 64 path): paddings 1,1,1,0
    cfg = [(dim, 2 * dim), (2 * dim, 3 * dim), (3 * dim, 4 * dim), (4 * dim, 5 * dim)]
    pads = (1, 1, 1, 0)
    for p, (cin, cout), pad in zip(params['resblocks'], cfg, pads):
        cp_in = _round_up(cin, LANE)
        cp_out = _round_up(cout, LANE)
        h = resblock_forward_pallas(h, p, cp_in, cp_out, 4, 2, pad, a, b)

    # h: [N, 1, 1, Cp]  ->  strip channel padding, match torch .view(N, C, H)
    c_final = 5 * dim
    out_nchw = jnp.transpose(h[..., :c_final], (0, 3, 1, 2))   # [N, C, 1, 1]
    return out_nchw.reshape(out_nchw.shape[0], out_nchw.shape[1], out_nchw.shape[2])


# ----------------------------------------------------------------------------
# Pure-JAX reference (PyTorch eval-mode semantics, same MXU operand precision)
# ----------------------------------------------------------------------------

def conv2d_ref(x, w, bias, stride, pad, mxu_dtype):
    y = lax.conv_general_dilated(
        x.astype(mxu_dtype), w.astype(mxu_dtype),
        (stride, stride), ((pad, pad), (pad, pad)),
        dimension_numbers=('NCHW', 'OIHW', 'NCHW'),
        preferred_element_type=jnp.float32)
    if bias is not None:
        y = y + bias[None, :, None, None]
    return y


def bn_ref(x, gamma, beta, mean, var, eps=1e-5):
    inv = gamma / jnp.sqrt(var + eps)
    return x * inv[None, :, None, None] + (beta - mean * inv)[None, :, None, None]


def resblock_ref(x, p, k, stride, pad, a, b, mxu_dtype):
    h = jax.nn.relu(bn_ref(x, *p['bn1']))
    h = conv2d_ref(h, p['w1x1'], None, 1, 0, mxu_dtype)
    h = jax.nn.relu(bn_ref(h, *p['bn2']))
    h = conv2d_ref(h, p['w2'], None, stride, pad, mxu_dtype)
    d = bn_ref(conv2d_ref(x, p['wd'], p['bd'], stride, pad, mxu_dtype), *p['bn_d'])
    return a * d + b * h


def feature_extractor_ref(x, params, dim, a=2.0, b=0.3, mxu_dtype=jnp.float32):
    h = conv2d_ref(x, params['conv1_w'], None, 2, 1, mxu_dtype)
    for p, pad in zip(params['resblocks'], (1, 1, 1, 0)):
        h = resblock_ref(h, p, 4, 2, pad, a, b, mxu_dtype)
    return h.reshape(h.shape[0], h.shape[1], h.shape[2])


# ----------------------------------------------------------------------------

if __name__ == "__main__":
    key = jax.random.PRNGKey(0)
    batch, image_channels, img_size, DIM = 2, 3, 64, 8   # small-but-valid config

    kx, kp = jax.random.split(key)
    x = jax.random.normal(kx, (batch, image_channels, img_size, img_size), jnp.float32)
    params = make_params(kp, image_channels, DIM)

    out = jax.block_until_ready(feature_extractor_pallas(x, params, DIM))
    assert out.shape == (batch, 5 * DIM, 1), out.shape

    # Precision-matched reference: identical eval-mode math with the same MXU
    # operand dtype (bf16 by default), so any mismatch isolates layout / fusion
    # / accumulation-order bugs.  With MXU_DTYPE = jnp.float32 this is the
    # exact f32 reference and the same tolerance holds with large margin.
    ref = feature_extractor_ref(x, params, DIM, mxu_dtype=MXU_DTYPE)
    scale = float(jnp.max(jnp.abs(ref)))
    err = float(jnp.max(jnp.abs(out - ref)))
    assert err < 5e-3 + 2e-3 * scale, f"max abs err {err} (ref scale {scale})"

    print("KERNEL_OK")
</pallas_src>

<mosaic_0001>
module attributes {stable_mosaic.version = 11 : i64} {
  func.func @gemm_kernel(%arg0: i32, %arg1: memref<1024x27xf32, #tpu.memory_space<vmem>>, %arg2: memref<27x128xbf16, #tpu.memory_space<vmem>>, %arg3: memref<1024x128xf32, #tpu.memory_space<vmem>>) attributes {dimension_semantics = [#tpu.dimension_semantics<parallel>], iteration_bounds = array<i64: 2>, scalar_prefetch = 0 : i64, scratch_operands = 0 : i64, tpu.core_type = #tpu.core_type<tc>, window_params = [{transform_indices = @transform_0, window_bounds = array<i64: 1024, 27>}, {pipeline_mode = #tpu.pipeline_mode<synchronous>, transform_indices = @transform_1, window_bounds = array<i64: 27, 128>}, {transform_indices = @transform_2, window_bounds = array<i64: 1024, 128>}]} {
    %c0 = arith.constant 0 : index
    %c0_0 = arith.constant 0 : index
    %0 = vector.load %arg1[%c0, %c0_0] : memref<1024x27xf32, #tpu.memory_space<vmem>>, vector<1024x27xf32>
    %1 = arith.truncf %0 : vector<1024x27xf32> to vector<1024x27xbf16>
    %c0_1 = arith.constant 0 : index
    %c0_2 = arith.constant 0 : index
    %2 = vector.load %arg2[%c0_1, %c0_2] : memref<27x128xbf16, #tpu.memory_space<vmem>>, vector<27x128xbf16>
    %cst = arith.constant dense<0.000000e+00> : vector<1024x128xf32>
    %3 = tpu.matmul %1, %2, %cst {dimension_numbers = #tpu.dot_dimension_numbers<[1], [0], [0], [1], [0, 0, 1, 1], [], []>} : vector<1024x27xbf16>, vector<27x128xbf16>, vector<1024x128xf32> -> vector<1024x128xf32>
    %c0_3 = arith.constant 0 : index
    %c0_4 = arith.constant 0 : index
    %4 = vector.load %arg3[%c0_3, %c0_4] : memref<1024x128xf32, #tpu.memory_space<vmem>>, vector<1024x128xf32>
    tpu.vector_store %arg3[%c0_3, %c0_4], %3 {strides = array<i32>} : memref<1024x128xf32, #tpu.memory_space<vmem>>, vector<1024x128xf32>,
    return
  }
  func.func @transform_0(%arg0: i32) -> (i32, i32) {
    %c0_i32 = arith.constant 0 : i32
    %c0_i32_0 = arith.constant 0 : i32
    return %arg0, %c0_i32 : i32, i32
  }
  func.func @transform_1(%arg0: i32) -> (i32, i32) {
    %c0_i32 = arith.constant 0 : i32
    %c0_i32_0 = arith.constant 0 : i32
    %c0_i32_1 = arith.constant 0 : i32
    return %c0_i32, %c0_i32_0 : i32, i32
  }
  func.func @transform_2(%arg0: i32) -> (i32, i32) {
    %c0_i32 = arith.constant 0 : i32
    %c0_i32_0 = arith.constant 0 : i32
    return %arg0, %c0_i32 : i32, i32
  }
}

</mosaic_0001>

<llo_original>
// kernel: tpu_custom_call.1
$region0: #{tpu_custom_call.1}
  #allocation0 [shape = 'u32[]', space=smem, size = 0x4, offset = 0x4, fixed_abs, tag = 'smem constant byte address 0x4 - core index']
  #allocation1 [shape = 'u32[144,128]{1,0:T(1,128)}', space=vmem, size = 0x12000, scoped, tag = 'internal scratch']
  %s0 = inlined_call_operand.vmem [shape: f32[2048,27], index: 0, kind: input, shape index: {}]
  %s1 = inlined_call_operand.vmem [shape: bf16[27,128], index: 1, kind: input, shape index: {}]
  %s2 = inlined_call_operand.hbm [shape: f32[2048,128], index: 2, kind: output, shape index: {}]
  %s3 = sld [smem:[#allocation0]]
  $region41: #{tpu_custom_call.1} parent=0
    _
  %s5 = ssub.s32 1, %s3
  %s6 = scalar_select 0, %s5, %s3
  $region1: #{tpu_custom_call.1} parent=0
    #allocation2 [shape = 'u8[1048576]{0}', space=vmem, size = 0x100000, scoped, tag = 'output window, operand 0']
    #allocation3 [shape = 's32[2]{0}', space=sflag, size = 0x8, scoped, tag = 'scoped memory for tpu_custom_call.1']
    %7 = vsyncpa [#allocation3], 0
    %s8 = scalar_lea.sflag [#allocation3], 1
    %9 = vsyncpa %s8, 0
    loop: start=0, step=1, limit=4
    $region2: #{tpu_custom_call.1} parent=1 // loop_pre_header
      _
    $region3: #{tpu_custom_call.1} parent=1 // loop_header
      %s11 = sphi 0, %s15
      %p12 = scmp.ge.s32.totalorder %s11, 4
      %s21 = sphi 0, %s23
      %s24 = sphi 0, %s21
      %s25 = sphi 0, %s24
      %s41 = sphi 0, %s25
      %s45 = sphi 0, %s45
      %s47 = sphi 0, %s45
      %s48 = sphi 0, %s47
      %s62 = sphi 0, %s48
      %s68 = sphi 0, %s70
      %s71 = sphi 0, %s68
      %s72 = sphi 0, %s71
      %s88 = sphi 0, %s72
    $region4: #{tpu_custom_call.1} parent=1 // loop_header_branch
      %14 = sbr.rel (%p12) target = $region8
    $region5: #{tpu_custom_call.1} parent=1 // loop_body
      %s16 = ssub.s32 %s11, 1
      %s17 = ssub.s32 %s11, 2
      %s18 = sadd.s32 %s11, 1
      %s19 = ssub.s32 %s11, %s18
      %p20 = scmp.eq.s32.totalorder %s19, 0
      %s22 = sadd.s32 %s21, 1
      %s23 = scalar_select %p20, %s21, %s22
      %p26 = pneg %p20
      %p27 = scmp.eq.s32.totalorder %s11, 1
      %p28 = por %p26, %p27
      %p29 = scmp.ne.s32.totalorder %s21, %s24
      %p30 = scmp.eq.s32.totalorder %s11, 0
      %p31 = por %p29, %p30
      %p32 = scmp.ne.s32.totalorder %s21, %s24
      %p33 = scmp.eq.s32.totalorder %s16, 1
      %p34 = por %p32, %p33
      %p35 = scmp.ne.s32.totalorder %s24, %s25
      %p36 = scmp.eq.s32.totalorder %s16, 0
      %p37 = por %p35, %p36
      %p38 = scmp.ne.s32.totalorder %s24, %s25
      %p39 = scmp.eq.s32.totalorder %s17, 1
      %p40 = por %p38, %p39
      %p42 = scmp.ne.s32.totalorder %s25, %s41
      %p43 = scmp.eq.s32.totalorder %s17, 0
      %p44 = por %p42, %p43
      %s46 = sadd.s32 %s45, 1
      %p49 = scmp.eq.s32.totalorder %s11, 1
      %p50 = scmp.ne.s32.totalorder %s45, %s47
      %p51 = scmp.eq.s32.totalorder %s11, 0
      %p52 = por %p50, %p51
      %p53 = scmp.ne.s32.totalorder %s45, %s47
      %p54 = scmp.eq.s32.totalorder %s16, 1
      %p55 = por %p53, %p54
      %p56 = scmp.ne.s32.totalorder %s47, %s48
      %p57 = scmp.eq.s32.totalorder %s16, 0
      %p58 = por %p56, %p57
      %p59 = scmp.ne.s32.totalorder %s47, %s48
      %p60 = scmp.eq.s32.totalorder %s17, 1
      %p61 = por %p59, %p60
      %p63 = scmp.ne.s32.totalorder %s48, %s62
      %p64 = scmp.eq.s32.totalorder %s17, 0
      %p65 = por %p63, %p64
      %s66 = ssub.s32 %s11, %s18
      %p67 = scmp.eq.s32.totalorder %s66, 0
      %s69 = sadd.s32 %s68, 1
      %s70 = scalar_select %p67, %s68, %s69
      %p73 = pneg %p67
      %p74 = scmp.eq.s32.totalorder %s11, 1
      %p75 = por %p73, %p74
      %p76 = scmp.ne.s32.totalorder %s68, %s71
      %p77 = scmp.eq.s32.totalorder %s11, 0
      %p78 = por %p76, %p77
      %p79 = scmp.ne.s32.totalorder %s68, %s71
      %p80 = scmp.eq.s32.totalorder %s16, 1
      %p81 = por %p79, %p80
      %p82 = scmp.ne.s32.totalorder %s71, %s72
      %p83 = scmp.eq.s32.totalorder %s16, 0
      %p84 = por %p82, %p83
      %p85 = scmp.ne.s32.totalorder %s71, %s72
      %p86 = scmp.eq.s32.totalorder %s17, 1
      %p87 = por %p85, %p86
      %p89 = scmp.ne.s32.totalorder %s72, %s88
      %p90 = scmp.eq.s32.totalorder %s17, 0
      %p91 = por %p89, %p90
      %p92 = scmp.le.s32.totalorder 1, %s11
      %p93 = scmp.lt.s32.totalorder %s11, 3
      %p94 = pnand %p92, %p93
      %p95 = pneg %p94
      // Predicated region
      $region9: #{tpu_custom_call.1} parent=5 // pred_check
        _
      $region10: #{tpu_custom_call.1} parent=5 // pred_check_branch
        %97 = sbr.rel (%p94) target = $region12
      $region11: #{tpu_custom_call.1} parent=5 // pred_region
        %s98 = ssub.s32 %s11, 1
        // Predicated region
        $region13: #{tpu_custom_call.1} parent=11 // pred_check
          %p99 = pneg %p58
        $region14: #{tpu_custom_call.1} parent=11 // pred_check_branch
          %101 = sbr.rel (%p99) target = $region16
        $region15: #{tpu_custom_call.1} parent=11 // pred_region
          _
        $region16: #{tpu_custom_call.1} parent=11 // pred_fallthru
          _
      $region12: #{tpu_custom_call.1} parent=5 // pred_fallthru
        _
      %p102 = scmp.lt.s32.totalorder %s11, 2
      // Predicated region
      $region17: #{tpu_custom_call.1} parent=5 // pred_check
        %p103 = pneg %p102
      $region18: #{tpu_custom_call.1} parent=5 // pred_check_branch
        %105 = sbr.rel (%p103) target = $region20
      $region19: #{tpu_custom_call.1} parent=5 // pred_region
        // Predicated region
        $region21: #{tpu_custom_call.1} parent=19 // pred_check
          %p106 = pneg %p31
        $region22: #{tpu_custom_call.1} parent=19 // pred_check_branch
          %108 = sbr.rel (%p106) target = $region24
        $region23: #{tpu_custom_call.1} parent=19 // pred_region
          %s109 = smul.u32 128, %s11
          %p110 = scmp.lt.s32.totalorder %s109, 255
          %s111 = scalar_select %p110, %s109, 255
          %s112 = smul.addr %s111, 8
          %s113 = scalar_lea.vmem %s0, %s112
          %s114 = smul.u32 128, %s11
        $region24: #{tpu_custom_call.1} parent=19 // pred_fallthru
          _
      $region20: #{tpu_custom_call.1} parent=5 // pred_fallthru
        _
      %p115 = scmp.le.s32.totalorder 1, %s11
      %p116 = scmp.lt.s32.totalorder %s11, 3
      %p117 = pnand %p115, %p116
      %p118 = pneg %p117
      // Predicated region
      $region25: #{tpu_custom_call.1} parent=5 // pred_check
        _
      $region26: #{tpu_custom_call.1} parent=5 // pred_check_branch
        %120 = sbr.rel (%p117) target = $region28
      $region27: #{tpu_custom_call.1} parent=5 // pred_region
        %s121 = ssub.s32 %s11, 1
        %s122 = smul.u32 128, %s16
        %p123 = scmp.lt.s32.totalorder %s122, 255
        %s124 = scalar_select %p123, %s122, 255
        %s125 = smul.addr %s124, 8
        %s126 = scalar_lea.vmem %s0, %s125
        %p127 = pneg %p37
        %p128 = pneg %p34
        %p129 = pneg %p58
        %p130 = pneg %p55
        %p131 = pneg %p84
        %p132 = pneg %p81
        %s133 = sand.u32 %s71, 1
        %s134 = scalar_lea.sflag [#allocation3], %s133
        %s135 = sand.u32 %s71, 1
        %s136 = smul.addr %s135, 1024
        %s137 = scalar_lea.vmem [#allocation2], %s136
        %s138 = smul.u32 128, %s16
        %p139 = scmp.lt.s32.totalorder %s138, 255
        %s140 = scalar_select %p139, %s138, 255
        %s141 = smul.addr %s140, 8
        %s142 = scalar_lea.vmem %s0, %s141
        %s143 = smul.u32 128, %s16
        %s144 = smul.u32 128, %s16
        %v146 = vld [vmem:[%s142] sm:$0xff]
        %v147 = vld [vmem:[%s142 + $0x8] sm:$0xff]
        %v148 = vld [vmem:[%s142 + $0x10] sm:$0xff]
        %v149 = vld [vmem:[%s142 + $0x18] sm:$0xff]
        %v150 = vld [vmem:[%s142 + $0x20] sm:$0xff]
        %v151 = vld [vmem:[%s142 + $0x28] sm:$0xff]
        %v152 = vld [vmem:[%s142 + $0x30] sm:$0xff]
        %v153 = vld [vmem:[%s142 + $0x38] sm:$0xff]
        %v154 = vld [vmem:[%s142 + $0x40] sm:$0xff]
        %v155 = vld [vmem:[%s142 + $0x48] sm:$0xff]
        %v156 = vld [vmem:[%s142 + $0x50] sm:$0xff]
        %v157 = vld [vmem:[%s142 + $0x58] sm:$0xff]
        %v158 = vld [vmem:[%s142 + $0x60] sm:$0xff]
        %v159 = vld [vmem:[%s142 + $0x68] sm:$0xff]
        %v160 = vld [vmem:[%s142 + $0x70] sm:$0xff]
        %v161 = vld [vmem:[%s142 + $0x78] sm:$0xff]
        %v162 = vld [vmem:[%s142 + $0x80] sm:$0xff]
        %v163 = vld [vmem:[%s142 + $0x88] sm:$0xff]
        %v164 = vld [vmem:[%s142 + $0x90] sm:$0xff]
        %v165 = vld [vmem:[%s142 + $0x98] sm:$0xff]
        %v166 = vld [vmem:[%s142 + $0xa0] sm:$0xff]
        %v167 = vld [vmem:[%s142 + $0xa8] sm:$0xff]
        %v168 = vld [vmem:[%s142 + $0xb0] sm:$0xff]
        %v169 = vld [vmem:[%s142 + $0xb8] sm:$0xff]
        %v170 = vld [vmem:[%s142 + $0xc0] sm:$0xff]
        %v171 = vld [vmem:[%s142 + $0xc8] sm:$0xff]
        %v172 = vld [vmem:[%s142 + $0xd0] sm:$0xff]
        %v173 = vld [vmem:[%s142 + $0xd8] sm:$0xff]
        %v174 = vld [vmem:[%s142 + $0xe0] sm:$0xff]
        %v175 = vld [vmem:[%s142 + $0xe8] sm:$0xff]
        %v176 = vld [vmem:[%s142 + $0xf0] sm:$0xff]
        %v177 = vld [vmem:[%s142 + $0xf8] sm:$0xff]
        %v178 = vld [vmem:[%s142 + $0x100] sm:$0xff]
        %v179 = vld [vmem:[%s142 + $0x108] sm:$0xff]
        %v180 = vld [vmem:[%s142 + $0x110] sm:$0xff]
        %v181 = vld [vmem:[%s142 + $0x118] sm:$0xff]
        %v182 = vld [vmem:[%s142 + $0x120] sm:$0xff]
        %v183 = vld [vmem:[%s142 + $0x128] sm:$0xff]
        %v184 = vld [vmem:[%s142 + $0x130] sm:$0xff]
        %v185 = vld [vmem:[%s142 + $0x138] sm:$0xff]
        %v186 = vld [vmem:[%s142 + $0x140] sm:$0xff]
        %v187 = vld [vmem:[%s142 + $0x148] sm:$0xff]
        %v188 = vld [vmem:[%s142 + $0x150] sm:$0xff]
        %v189 = vld [vmem:[%s142 + $0x158] sm:$0xff]
        %v190 = vld [vmem:[%s142 + $0x160] sm:$0xff]
        %v191 = vld [vmem:[%s142 + $0x168] sm:$0xff]
        %v192 = vld [vmem:[%s142 + $0x170] sm:$0xff]
        %v193 = vld [vmem:[%s142 + $0x178] sm:$0xff]
        %v194 = vld [vmem:[%s142 + $0x180] sm:$0xff]
        %v195 = vld [vmem:[%s142 + $0x188] sm:$0xff]
        %v196 = vld [vmem:[%s142 + $0x190] sm:$0xff]
        %v197 = vld [vmem:[%s142 + $0x198] sm:$0xff]
        %v198 = vld [vmem:[%s142 + $0x1a0] sm:$0xff]
        %v199 = vld [vmem:[%s142 + $0x1a8] sm:$0xff]
        %v200 = vld [vmem:[%s142 + $0x1b0] sm:$0xff]
        %v201 = vld [vmem:[%s142 + $0x1b8] sm:$0xff]
        %v202 = vld [vmem:[%s142 + $0x1c0] sm:$0xff]
        %v203 = vld [vmem:[%s142 + $0x1c8] sm:$0xff]
        %v204 = vld [vmem:[%s142 + $0x1d0] sm:$0xff]
        %v205 = vld [vmem:[%s142 + $0x1d8] sm:$0xff]
        %v206 = vld [vmem:[%s142 + $0x1e0] sm:$0xff]
        %v207 = vld [vmem:[%s142 + $0x1e8] sm:$0xff]
        %v208 = vld [vmem:[%s142 + $0x1f0] sm:$0xff]
        %v209 = vld [vmem:[%s142 + $0x1f8] sm:$0xff]
        %v210 = vld [vmem:[%s142 + $0x200] sm:$0xff]
        %v211 = vld [vmem:[%s142 + $0x208] sm:$0xff]
        %v212 = vld [vmem:[%s142 + $0x210] sm:$0xff]
        %v213 = vld [vmem:[%s142 + $0x218] sm:$0xff]
        %v214 = vld [vmem:[%s142 + $0x220] sm:$0xff]
        %v215 = vld [vmem:[%s142 + $0x228] sm:$0xff]
        %v216 = vld [vmem:[%s142 + $0x230] sm:$0xff]
        %v217 = vld [vmem:[%s142 + $0x238] sm:$0xff]
        %v218 = vld [vmem:[%s142 + $0x240] sm:$0xff]
        %v219 = vld [vmem:[%s142 + $0x248] sm:$0xff]
        %v220 = vld [vmem:[%s142 + $0x250] sm:$0xff]
        %v221 = vld [vmem:[%s142 + $0x258] sm:$0xff]
        %v222 = vld [vmem:[%s142 + $0x260] sm:$0xff]
        %v223 = vld [vmem:[%s142 + $0x268] sm:$0xff]
        %v224 = vld [vmem:[%s142 + $0x270] sm:$0xff]
        %v225 = vld [vmem:[%s142 + $0x278] sm:$0xff]
        %v226 = vld [vmem:[%s142 + $0x280] sm:$0xff]
        %v227 = vld [vmem:[%s142 + $0x288] sm:$0xff]
        %v228 = vld [vmem:[%s142 + $0x290] sm:$0xff]
        %v229 = vld [vmem:[%s142 + $0x298] sm:$0xff]
        %v230 = vld [vmem:[%s142 + $0x2a0] sm:$0xff]
        %v231 = vld [vmem:[%s142 + $0x2a8] sm:$0xff]
        %v232 = vld [vmem:[%s142 + $0x2b0] sm:$0xff]
        %v233 = vld [vmem:[%s142 + $0x2b8] sm:$0xff]
        %v234 = vld [vmem:[%s142 + $0x2c0] sm:$0xff]
        %v235 = vld [vmem:[%s142 + $0x2c8] sm:$0xff]
        %v236 = vld [vmem:[%s142 + $0x2d0] sm:$0xff]
        %v237 = vld [vmem:[%s142 + $0x2d8] sm:$0xff]
        %v238 = vld [vmem:[%s142 + $0x2e0] sm:$0xff]
        %v239 = vld [vmem:[%s142 + $0x2e8] sm:$0xff]
        %v240 = vld [vmem:[%s142 + $0x2f0] sm:$0xff]
        %v241 = vld [vmem:[%s142 + $0x2f8] sm:$0xff]
        %v242 = vld [vmem:[%s142 + $0x300] sm:$0xff]
        %v243 = vld [vmem:[%s142 + $0x308] sm:$0xff]
        %v244 = vld [vmem:[%s142 + $0x310] sm:$0xff]
        %v245 = vld [vmem:[%s142 + $0x318] sm:$0xff]
        %v246 = vld [vmem:[%s142 + $0x320] sm:$0xff]
        %v247 = vld [vmem:[%s142 + $0x328] sm:$0xff]
        %v248 = vld [vmem:[%s142 + $0x330] sm:$0xff]
        %v249 = vld [vmem:[%s142 + $0x338] sm:$0xff]
        %v250 = vld [vmem:[%s142 + $0x340] sm:$0xff]
        %v251 = vld [vmem:[%s142 + $0x348] sm:$0xff]
        %v252 = vld [vmem:[%s142 + $0x350] sm:$0xff]
        %v253 = vld [vmem:[%s142 + $0x358] sm:$0xff]
        %v254 = vld [vmem:[%s142 + $0x360] sm:$0xff]
        %v255 = vld [vmem:[%s142 + $0x368] sm:$0xff]
        %v256 = vld [vmem:[%s142 + $0x370] sm:$0xff]
        %v257 = vld [vmem:[%s142 + $0x378] sm:$0xff]
        %v258 = vld [vmem:[%s142 + $0x380] sm:$0xff]
        %v259 = vld [vmem:[%s142 + $0x388] sm:$0xff]
        %v260 = vld [vmem:[%s142 + $0x390] sm:$0xff]
        %v261 = vld [vmem:[%s142 + $0x398] sm:$0xff]
        %v262 = vld [vmem:[%s142 + $0x3a0] sm:$0xff]
        %v263 = vld [vmem:[%s142 + $0x3a8] sm:$0xff]
        %v264 = vld [vmem:[%s142 + $0x3b0] sm:$0xff]
        %v265 = vld [vmem:[%s142 + $0x3b8] sm:$0xff]
        %v266 = vld [vmem:[%s142 + $0x3c0] sm:$0xff]
        %v267 = vld [vmem:[%s142 + $0x3c8] sm:$0xff]
        %v268 = vld [vmem:[%s142 + $0x3d0] sm:$0xff]
        %v269 = vld [vmem:[%s142 + $0x3d8] sm:$0xff]
        %v270 = vld [vmem:[%s142 + $0x3e0] sm:$0xff]
        %v271 = vld [vmem:[%s142 + $0x3e8] sm:$0xff]
        %v272 = vld [vmem:[%s142 + $0x3f0] sm:$0xff]
        %v273 = vld [vmem:[%s142 + $0x3f8] sm:$0xff]
        %v274 = vpack.c.bf16 %v147, %v146
        %v275 = vpack.c.bf16 %v149, %v148
        %v276 = vpack.c.bf16 %v151, %v150
        %v277 = vpack.c.bf16 %v153, %v152
        %v278 = vpack.c.bf16 %v155, %v154
        %v279 = vpack.c.bf16 %v157, %v156
        %v280 = vpack.c.bf16 %v159, %v158
        %v281 = vpack.c.bf16 %v161, %v160
        %v282 = vpack.c.bf16 %v163, %v162
        %v283 = vpack.c.bf16 %v165, %v164
        %v284 = vpack.c.bf16 %v167, %v166
        %v285 = vpack.c.bf16 %v169, %v168
        %v286 = vpack.c.bf16 %v171, %v170
        %v287 = vpack.c.bf16 %v173, %v172
        %v288 = vpack.c.bf16 %v175, %v174
        %v289 = vpack.c.bf16 %v177, %v176
        %v290 = vpack.c.bf16 %v179, %v178
        %v291 = vpack.c.bf16 %v181, %v180
        %v292 = vpack.c.bf16 %v183, %v182
        %v293 = vpack.c.bf16 %v185, %v184
        %v294 = vpack.c.bf16 %v187, %v186
        %v295 = vpack.c.bf16 %v189, %v188
        %v296 = vpack.c.bf16 %v191, %v190
        %v297 = vpack.c.bf16 %v193, %v192
        %v298 = vpack.c.bf16 %v195, %v194
        %v299 = vpack.c.bf16 %v197, %v196
        %v300 = vpack.c.bf16 %v199, %v198
        %v301 = vpack.c.bf16 %v201, %v200
        %v302 = vpack.c.bf16 %v203, %v202
        %v303 = vpack.c.bf16 %v205, %v204
        %v304 = vpack.c.bf16 %v207, %v206
        %v305 = vpack.c.bf16 %v209, %v208
        %v306 = vpack.c.bf16 %v211, %v210
        %v307 = vpack.c.bf16 %v213, %v212
        %v308 = vpack.c.bf16 %v215, %v214
        %v309 = vpack.c.bf16 %v217, %v216
        %v310 = vpack.c.bf16 %v219, %v218
        %v311 = vpack.c.bf16 %v221, %v220
        %v312 = vpack.c.bf16 %v223, %v222
        %v313 = vpack.c.bf16 %v225, %v224
        %v314 = vpack.c.bf16 %v227, %v226
        %v315 = vpack.c.bf16 %v229, %v228
        %v316 = vpack.c.bf16 %v231, %v230
        %v317 = vpack.c.bf16 %v233, %v232
        %v318 = vpack.c.bf16 %v235, %v234
        %v319 = vpack.c.bf16 %v237, %v236
        %v320 = vpack.c.bf16 %v239, %v238
        %v321 = vpack.c.bf16 %v241, %v240
        %v322 = vpack.c.bf16 %v243, %v242
        %v323 = vpack.c.bf16 %v245, %v244
        %v324 = vpack.c.bf16 %v247, %v246
        %v325 = vpack.c.bf16 %v249, %v248
        %v326 = vpack.c.bf16 %v251, %v250
        %v327 = vpack.c.bf16 %v253, %v252
        %v328 = vpack.c.bf16 %v255, %v254
        %v329 = vpack.c.bf16 %v257, %v256
        %v330 = vpack.c.bf16 %v259, %v258
        %v331 = vpack.c.bf16 %v261, %v260
        %v332 = vpack.c.bf16 %v263, %v262
        %v333 = vpack.c.bf16 %v265, %v264
        %v334 = vpack.c.bf16 %v267, %v266
        %v335 = vpack.c.bf16 %v269, %v268
        %v336 = vpack.c.bf16 %v271, %v270
        %v337 = vpack.c.bf16 %v273, %v272
        %v338 = vld [vmem:[%s1] sm:$0xf]
        %v339 = vld [vmem:[%s1 + $0x4] sm:$0xf]
        %v340 = vld [vmem:[%s1 + $0x8] sm:$0xf]
        %v341 = vld [vmem:[%s1 + $0xc] sm:$0x3]
        %v346 = vunpack.c.l.b16 %v338
        %v347 = vunpack.c.l.b16 %v339
        %v348 = vunpack.c.l.b16 %v340
        %v349 = vunpack.c.l.b16 %v341
        %v350 = vpack.c.b16 %v347, %v346
        %v351 = vpack.c.b16 %v349, %v348
        %vm353 = vcmask 220160
        %v355 = vsel %vm353, %v274, 0
        %v358 = vsel %vm353, %v275, 0
        %v361 = vsel %vm353, %v276, 0
        %v364 = vsel %vm353, %v277, 0
        %v367 = vsel %vm353, %v278, 0
        %v370 = vsel %vm353, %v279, 0
        %v373 = vsel %vm353, %v280, 0
        %v376 = vsel %vm353, %v281, 0
        %v379 = vsel %vm353, %v282, 0
        %v382 = vsel %vm353, %v283, 0
        %v385 = vsel %vm353, %v284, 0
        %v388 = vsel %vm353, %v285, 0
        %v391 = vsel %vm353, %v286, 0
        %v394 = vsel %vm353, %v287, 0
        %v397 = vsel %vm353, %v288, 0
        %v400 = vsel %vm353, %v289, 0
        %v403 = vsel %vm353, %v290, 0
        %v406 = vsel %vm353, %v291, 0
        %v409 = vsel %vm353, %v292, 0
        %v412 = vsel %vm353, %v293, 0
        %v415 = vsel %vm353, %v294, 0
        %v418 = vsel %vm353, %v295, 0
        %v421 = vsel %vm353, %v296, 0
        %v424 = vsel %vm353, %v297, 0
        %v427 = vsel %vm353, %v298, 0
        %v430 = vsel %vm353, %v299, 0
        %v433 = vsel %vm353, %v300, 0
        %v436 = vsel %vm353, %v301, 0
        %v439 = vsel %vm353, %v302, 0
        %v442 = vsel %vm353, %v303, 0
        %v445 = vsel %vm353, %v304, 0
        %v448 = vsel %vm353, %v305, 0
        %v451 = vsel %vm353, %v306, 0
        %v454 = vsel %vm353, %v307, 0
        %v457 = vsel %vm353, %v308, 0
        %v460 = vsel %vm353, %v309, 0
        %v463 = vsel %vm353, %v310, 0
        %v466 = vsel %vm353, %v311, 0
        %v469 = vsel %vm353, %v312, 0
        %v472 = vsel %vm353, %v313, 0
        %v475 = vsel %vm353, %v314, 0
        %v478 = vsel %vm353, %v315, 0
        %v481 = vsel %vm353, %v316, 0
        %v484 = vsel %vm353, %v317, 0
        %v487 = vsel %vm353, %v318, 0
        %v490 = vsel %vm353, %v319, 0
        %v493 = vsel %vm353, %v320, 0
        %v496 = vsel %vm353, %v321, 0
        %v499 = vsel %vm353, %v322, 0
        %v502 = vsel %vm353, %v323, 0
        %v505 = vsel %vm353, %v324, 0
        %v508 = vsel %vm353, %v325, 0
        %v511 = vsel %vm353, %v326, 0
        %v514 = vsel %vm353, %v327, 0
        %v517 = vsel %vm353, %v328, 0
        %v520 = vsel %vm353, %v329, 0
        %v523 = vsel %vm353, %v330, 0
        %v526 = vsel %vm353, %v331, 0
        %v529 = vsel %vm353, %v332, 0
        %v532 = vsel %vm353, %v333, 0
        %v535 = vsel %vm353, %v334, 0
        %v538 = vsel %vm353, %v335, 0
        %v541 = vsel %vm353, %v336, 0
        %v544 = vsel %vm353, %v337, 0
        %vm546 = vcmask 1044480
        %vm547 = vcmask 1045504
        %v548 = vsel %vm546, 4294967295, 65535
        %v549 = vsel %vm547, %v548, 0
        %v551 = vand.u32 %v351, %v549
        %553 = vmatprep.subr.bf16.mxu0 0
        %554 = vmatpush1.bf16.msra.mxu0 %v350
        %555 = vmatprep.subr.bf16.mxu0 0
        %556 = vmatpush1.bf16.msra.mxu0 %v551
        %557 = vmatprep.subr.bf16.mxu0 0
        %558 = vmatpush1.bf16.msra.mxu0 0
        %559 = vmatprep.subr.bf16.mxu0 0
        %560 = vmatpush1.bf16.msra.mxu0 0
        %561 = vmatprep.subr.bf16.mxu0 0
        %562 = vmatpush1.bf16.msra.mxu0 0
        %563 = vmatprep.subr.bf16.mxu0 0
        %564 = vmatpush1.bf16.msra.mxu0 0
        %565 = vmatprep.subr.bf16.mxu0 0
        %566 = vmatpush1.bf16.msra.mxu0 0
        %567 = vmatprep.subr.bf16.mxu0 0
        %568 = vmatpush1.bf16.msra.mxu0 0
        %569 = vmatprep.subr.bf16.mxu0 0
        %570 = vmatpush1.bf16.msra.mxu0 0
        %571 = vmatprep.subr.bf16.mxu0 0
        %572 = vmatpush1.bf16.msra.mxu0 0
        %573 = vmatprep.subr.bf16.mxu0 0
        %574 = vmatpush1.bf16.msra.mxu0 0
        %575 = vmatprep.subr.bf16.mxu0 0
        %576 = vmatpush1.bf16.msra.mxu0 0
        %577 = vmatprep.subr.bf16.mxu0 0
        %578 = vmatpush1.bf16.msra.mxu0 0
        %579 = vmatprep.subr.bf16.mxu0 0
        %580 = vmatpush1.bf16.msra.mxu0 0
        %581 = vmatprep.subr.bf16.mxu0 0
        %582 = vmatpush1.bf16.msra.mxu0 0
        %583 = vmatprep.subr.bf16.mxu0 0
        %584 = vmatpush1.bf16.msra.mxu0 0
        %585 = vmatprep.mubr.bf16.mxu0 0
        %586 = vmatmul.mubr.bf16.gmra.mrb[0].mxu0 %v355
        %v587 = vpop.f32.mrb[0].mxu0
        %v588 = vadd.f32 0.0, %v587
        %v589 = vpop.f32.mrb[0].mxu0
        %v590 = vpop.f32.mrb[0].mxu0
        %v591 = vadd.f32 0.0, %v590
        %v592 = vpop.f32.mrb[0].mxu0
        %593 = vmatprep.mubr.bf16.mxu0 0
        %594 = vmatmul.mubr.bf16.gmra.mrb[0].mxu0 %v358
        %v595 = vpop.f32.mrb[0].mxu0
        %v596 = vadd.f32 0.0, %v595
        %v597 = vpop.f32.mrb[0].mxu0
        %v598 = vpop.f32.mrb[0].mxu0
        %v599 = vadd.f32 0.0, %v598
        %v600 = vpop.f32.mrb[0].mxu0
        %601 = vmatprep.mubr.bf16.mxu0 0
        %602 = vmatmul.mubr.bf16.gmra.mrb[0].mxu0 %v361
        %v603 = vpop.f32.mrb[0].mxu0
        %v604 = vadd.f32 0.0, %v603
        %v605 = vpop.f32.mrb[0].mxu0
        %v606 = vpop.f32.mrb[0].mxu0
        %v607 = vadd.f32 0.0, %v606
        %v608 = vpop.f32.mrb[0].mxu0
        %609 = vmatprep.mubr.bf16.mxu0 0
        %610 = vmatmul.mubr.bf16.gmra.mrb[0].mxu0 %v364
        %v611 = vpop.f32.mrb[0].mxu0
        %v612 = vadd.f32 0.0, %v611
        %v613 = vpop.f32.mrb[0].mxu0
        %v614 = vpop.f32.mrb[0].mxu0
        %v615 = vadd.f32 0.0, %v614
        %v616 = vpop.f32.mrb[0].mxu0
        %617 = vmatprep.mubr.bf16.mxu0 0
        %618 = vmatmul.mubr.bf16.gmra.mrb[0].mxu0 %v367
        %v619 = vpop.f32.mrb[0].mxu0
        %v620 = vadd.f32 0.0, %v619
        %v621 = vpop.f32.mrb[0].mxu0
        %v622 = vpop.f32.mrb[0].mxu0
        %v623 = vadd.f32 0.0, %v622
        %v624 = vpop.f32.mrb[0].mxu0
        %625 = vmatprep.mubr.bf16.mxu0 0
        %626 = vmatmul.mubr.bf16.gmra.mrb[0].mxu0 %v370
        %v627 = vpop.f32.mrb[0].mxu0
        %v628 = vadd.f32 0.0, %v627
        %v629 = vpop.f32.mrb[0].mxu0
        %v630 = vpop.f32.mrb[0].mxu0
        %v631 = vadd.f32 0.0, %v630
        %v632 = vpop.f32.mrb[0].mxu0
        %633 = vmatprep.mubr.bf16.mxu0 0
        %634 = vmatmul.mubr.bf16.gmra.mrb[0].mxu0 %v373
        %v635 = vpop.f32.mrb[0].mxu0
        %v636 = vadd.f32 0.0, %v635
        %v637 = vpop.f32.mrb[0].mxu0
        %v638 = vpop.f32.mrb[0].mxu0
        %v639 = vadd.f32 0.0, %v638
        %v640 = vpop.f32.mrb[0].mxu0
        %641 = vmatprep.mubr.bf16.mxu0 0
        %642 = vmatmul.mubr.bf16.gmra.mrb[0].mxu0 %v376
        %v643 = vpop.f32.mrb[0].mxu0
        %v644 = vadd.f32 0.0, %v643
        %v645 = vpop.f32.mrb[0].mxu0
        %v646 = vpop.f32.mrb[0].mxu0
        %v647 = vadd.f32 0.0, %v646
        %v648 = vpop.f32.mrb[0].mxu0
        %649 = vmatprep.mubr.bf16.mxu0 0
        %650 = vmatmul.mubr.bf16.gmra.mrb[0].mxu0 %v379
        %v651 = vpop.f32.mrb[0].mxu0
        %v652 = vadd.f32 0.0, %v651
        %v653 = vpop.f32.mrb[0].mxu0
        %v654 = vpop.f32.mrb[0].mxu0
        %v655 = vadd.f32 0.0, %v654
        %v656 = vpop.f32.mrb[0].mxu0
        %657 = vmatprep.mubr.bf16.mxu0 0
        %658 = vmatmul.mubr.bf16.gmra.mrb[0].mxu0 %v382
        %v659 = vpop.f32.mrb[0].mxu0
        %v660 = vadd.f32 0.0, %v659
        %v661 = vpop.f32.mrb[0].mxu0
        %v662 = vpop.f32.mrb[0].mxu0
        %v663 = vadd.f32 0.0, %v662
        %v664 = vpop.f32.mrb[0].mxu0
        %665 = vmatprep.mubr.bf16.mxu0 0
        %666 = vmatmul.mubr.bf16.gmra.mrb[0].mxu0 %v385
        %v667 = vpop.f32.mrb[0].mxu0
        %v668 = vadd.f32 0.0, %v667
        %v669 = vpop.f32.mrb[0].mxu0
        %v670 = vpop.f32.mrb[0].mxu0
        %v671 = vadd.f32 0.0, %v670
        %v672 = vpop.f32.mrb[0].mxu0
        %673 = vmatprep.mubr.bf16.mxu0 0
        %674 = vmatmul.mubr.bf16.gmra.mrb[0].mxu0 %v388
        %v675 = vpop.f32.mrb[0].mxu0
        %v676 = vadd.f32 0.0, %v675
        %v677 = vpop.f32.mrb[0].mxu0
        %v678 = vpop.f32.mrb[0].mxu0
        %v679 = vadd.f32 0.0, %v678
        %v680 = vpop.f32.mrb[0].mxu0
        %681 = vmatprep.mubr.bf16.mxu0 0
        %682 = vmatmul.mubr.bf16.gmra.mrb[0].mxu0 %v391
        %v683 = vpop.f32.mrb[0].mxu0
        %v684 = vadd.f32 0.0, %v683
        %v685 = vpop.f32.mrb[0].mxu0
        %v686 = vpop.f32.mrb[0].mxu0
        %v687 = vadd.f32 0.0, %v686
        %v688 = vpop.f32.mrb[0].mxu0
        %689 = vmatprep.mubr.bf16.mxu0 0
        %690 = vmatmul.mubr.bf16.gmra.mrb[0].mxu0 %v394
        %v691 = vpop.f32.mrb[0].mxu0
        %v692 = vadd.f32 0.0, %v691
        %v693 = vpop.f32.mrb[0].mxu0
        %v694 = vpop.f32.mrb[0].mxu0
        %v695 = vadd.f32 0.0, %v694
        %v696 = vpop.f32.mrb[0].mxu0
        %697 = vmatprep.mubr.bf16.mxu0 0
        %698 = vmatmul.mubr.bf16.gmra.mrb[0].mxu0 %v397
        %v699 = vpop.f32.mrb[0].mxu0
        %v700 = vadd.f32 0.0, %v699
        %v701 = vpop.f32.mrb[0].mxu0
        %v702 = vpop.f32.mrb[0].mxu0
        %v703 = vadd.f32 0.0, %v702
        %v704 = vpop.f32.mrb[0].mxu0
        %705 = vmatprep.mubr.bf16.mxu0 0
        %706 = vmatmul.mubr.bf16.gmra.mrb[0].mxu0 %v400
        %v707 = vpop.f32.mrb[0].mxu0
        %v708 = vadd.f32 0.0, %v707
        %v709 = vpop.f32.mrb[0].mxu0
        %v710 = vpop.f32.mrb[0].mxu0
        %v711 = vadd.f32 0.0, %v710
        %v712 = vpop.f32.mrb[0].mxu0
        %713 = vmatprep.mubr.bf16.mxu0 0
        %714 = vmatmul.mubr.bf16.gmra.mrb[0].mxu0 %v403
        %v715 = vpop.f32.mrb[0].mxu0
        %v716 = vadd.f32 0.0, %v715
        %v717 = vpop.f32.mrb[0].mxu0
        %v718 = vpop.f32.mrb[0].mxu0
        %v719 = vadd.f32 0.0, %v718
        %v720 = vpop.f32.mrb[0].mxu0
        %721 = vmatprep.mubr.bf16.mxu0 0
        %722 = vmatmul.mubr.bf16.gmra.mrb[0].mxu0 %v406
        %v723 = vpop.f32.mrb[0].mxu0
        %v724 = vadd.f32 0.0, %v723
        %v725 = vpop.f32.mrb[0].mxu0
        %v726 = vpop.f32.mrb[0].mxu0
        %v727 = vadd.f32 0.0, %v726
        %v728 = vpop.f32.mrb[0].mxu0
        %729 = vmatprep.mubr.bf16.mxu0 0
        %730 = vmatmul.mubr.bf16.gmra.mrb[0].mxu0 %v409
        %v731 = vpop.f32.mrb[0].mxu0
        %v732 = vadd.f32 0.0, %v731
        %v733 = vpop.f32.mrb[0].mxu0
        %v734 = vpop.f32.mrb[0].mxu0
        %v735 = vadd.f32 0.0, %v734
        %v736 = vpop.f32.mrb[0].mxu0
        %737 = vmatprep.mubr.bf16.mxu0 0
        %738 = vmatmul.mubr.bf16.gmra.mrb[0].mxu0 %v412
        %v739 = vpop.f32.mrb[0].mxu0
        %v740 = vadd.f32 0.0, %v739
        %v741 = vpop.f32.mrb[0].mxu0
        %v742 = vpop.f32.mrb[0].mxu0
        %v743 = vadd.f32 0.0, %v742
        %v744 = vpop.f32.mrb[0].mxu0
        %745 = vmatprep.mubr.bf16.mxu0 0
        %746 = vmatmul.mubr.bf16.gmra.mrb[0].mxu0 %v415
        %v747 = vpop.f32.mrb[0].mxu0
        %v748 = vadd.f32 0.0, %v747
        %v749 = vpop.f32.mrb[0].mxu0
        %v750 = vpop.f32.mrb[0].mxu0
        %v751 = vadd.f32 0.0, %v750
        %v752 = vpop.f32.mrb[0].mxu0
        %753 = vmatprep.mubr.bf16.mxu0 0
        %754 = vmatmul.mubr.bf16.gmra.mrb[0].mxu0 %v418
        %v755 = vpop.f32.mrb[0].mxu0
        %v756 = vadd.f32 0.0, %v755
        %v757 = vpop.f32.mrb[0].mxu0
        %v758 = vpop.f32.mrb[0].mxu0
        %v759 = vadd.f32 0.0, %v758
        %v760 = vpop.f32.mrb[0].mxu0
        %761 = vmatprep.mubr.bf16.mxu0 0
        %762 = vmatmul.mubr.bf16.gmra.mrb[0].mxu0 %v421
        %v763 = vpop.f32.mrb[0].mxu0
        %v764 = vadd.f32 0.0, %v763
        %v765 = vpop.f32.mrb[0].mxu0
        %v766 = vpop.f32.mrb[0].mxu0
        %v767 = vadd.f32 0.0, %v766
        %v768 = vpop.f32.mrb[0].mxu0
        %769 = vmatprep.mubr.bf16.mxu0 0
        %770 = vmatmul.mubr.bf16.gmra.mrb[0].mxu0 %v424
        %v771 = vpop.f32.mrb[0].mxu0
        %v772 = vadd.f32 0.0, %v771
        %v773 = vpop.f32.mrb[0].mxu0
        %v774 = vpop.f32.mrb[0].mxu0
        %v775 = vadd.f32 0.0, %v774
        %v776 = vpop.f32.mrb[0].mxu0
        %777 = vmatprep.mubr.bf16.mxu0 0
        %778 = vmatmul.mubr.bf16.gmra.mrb[0].mxu0 %v427
        %v779 = vpop.f32.mrb[0].mxu0
        %v780 = vadd.f32 0.0, %v779
        %v781 = vpop.f32.mrb[0].mxu0
        %v782 = vpop.f32.mrb[0].mxu0
        %v783 = vadd.f32 0.0, %v782
        %v784 = vpop.f32.mrb[0].mxu0
        %785 = vmatprep.mubr.bf16.mxu0 0
        %786 = vmatmul.mubr.bf16.gmra.mrb[0].mxu0 %v430
        %v787 = vpop.f32.mrb[0].mxu0
        %v788 = vadd.f32 0.0, %v787
        %v789 = vpop.f32.mrb[0].mxu0
        %v790 = vpop.f32.mrb[0].mxu0
        %v791 = vadd.f32 0.0, %v790
        %v792 = vpop.f32.mrb[0].mxu0
        %793 = vmatprep.mubr.bf16.mxu0 0
        %794 = vmatmul.mubr.bf16.gmra.mrb[0].mxu0 %v433
        %v795 = vpop.f32.mrb[0].mxu0
        %v796 = vadd.f32 0.0, %v795
        %v797 = vpop.f32.mrb[0].mxu0
        %v798 = vpop.f32.mrb[0].mxu0
        %v799 = vadd.f32 0.0, %v798
        %v800 = vpop.f32.mrb[0].mxu0
        %801 = vmatprep.mubr.bf16.mxu0 0
        %802 = vmatmul.mubr.bf16.gmra.mrb[0].mxu0 %v436
        %v803 = vpop.f32.mrb[0].mxu0
        %v804 = vadd.f32 0.0, %v803
        %v805 = vpop.f32.mrb[0].mxu0
        %v806 = vpop.f32.mrb[0].mxu0
        %v807 = vadd.f32 0.0, %v806
        %v808 = vpop.f32.mrb[0].mxu0
        %809 = vmatprep.mubr.bf16.mxu0 0
        %810 = vmatmul.mubr.bf16.gmra.mrb[0].mxu0 %v439
        %v811 = vpop.f32.mrb[0].mxu0
        %v812 = vadd.f32 0.0, %v811
        %v813 = vpop.f32.mrb[0].mxu0
        %v814 = vpop.f32.mrb[0].mxu0
        %v815 = vadd.f32 0.0, %v814
        %v816 = vpop.f32.mrb[0].mxu0
        %817 = vmatprep.mubr.bf16.mxu0 0
        %818 = vmatmul.mubr.bf16.gmra.mrb[0].mxu0 %v442
        %v819 = vpop.f32.mrb[0].mxu0
        %v820 = vadd.f32 0.0, %v819
        %v821 = vpop.f32.mrb[0].mxu0
        %v822 = vpop.f32.mrb[0].mxu0
        %v823 = vadd.f32 0.0, %v822
        %v824 = vpop.f32.mrb[0].mxu0
        %825 = vmatprep.mubr.bf16.mxu0 0
        %826 = vmatmul.mubr.bf16.gmra.mrb[0].mxu0 %v445
        %v827 = vpop.f32.mrb[0].mxu0
        %v828 = vadd.f32 0.0, %v827
        %v829 = vpop.f32.mrb[0].mxu0
        %v830 = vpop.f32.mrb[0].mxu0
        %v831 = vadd.f32 0.0, %v830
        %v832 = vpop.f32.mrb[0].mxu0
        %833 = vmatprep.mubr.bf16.mxu0 0
        %834 = vmatmul.mubr.bf16.gmra.mrb[0].mxu0 %v448
        %v835 = vpop.f32.mrb[0].mxu0
        %v836 = vadd.f32 0.0, %v835
        %v837 = vpop.f32.mrb[0].mxu0
        %v838 = vpop.f32.mrb[0].mxu0
        %v839 = vadd.f32 0.0, %v838
        %v840 = vpop.f32.mrb[0].mxu0
        %841 = vmatprep.mubr.bf16.mxu0 0
        %842 = vmatmul.mubr.bf16.gmra.mrb[0].mxu0 %v451
        %v843 = vpop.f32.mrb[0].mxu0
        %v844 = vadd.f32 0.0, %v843
        %v845 = vpop.f32.mrb[0].mxu0
        %v846 = vpop.f32.mrb[0].mxu0
        %v847 = vadd.f32 0.0, %v846
        %v848 = vpop.f32.mrb[0].mxu0
        %849 = vmatprep.mubr.bf16.mxu0 0
        %850 = vmatmul.mubr.bf16.gmra.mrb[0].mxu0 %v454
        %v851 = vpop.f32.mrb[0].mxu0
        %v852 = vadd.f32 0.0, %v851
        %v853 = vpop.f32.mrb[0].mxu0
        %v854 = vpop.f32.mrb[0].mxu0
        %v855 = vadd.f32 0.0, %v854
        %v856 = vpop.f32.mrb[0].mxu0
        %857 = vmatprep.mubr.bf16.mxu0 0
        %858 = vmatmul.mubr.bf16.gmra.mrb[0].mxu0 %v457
        %v859 = vpop.f32.mrb[0].mxu0
        %v860 = vadd.f32 0.0, %v859
        %v861 = vpop.f32.mrb[0].mxu0
        %v862 = vpop.f32.mrb[0].mxu0
        %v863 = vadd.f32 0.0, %v862
        %v864 = vpop.f32.mrb[0].mxu0
        %865 = vmatprep.mubr.bf16.mxu0 0
        %866 = vmatmul.mubr.bf16.gmra.mrb[0].mxu0 %v460
        %v867 = vpop.f32.mrb[0].mxu0
        %v868 = vadd.f32 0.0, %v867
        %v869 = vpop.f32.mrb[0].mxu0
        %v870 = vpop.f32.mrb[0].mxu0
        %v871 = vadd.f32 0.0, %v870
        %v872 = vpop.f32.mrb[0].mxu0
        %873 = vmatprep.mubr.bf16.mxu0 0
        %874 = vmatmul.mubr.bf16.gmra.mrb[0].mxu0 %v463
        %v875 = vpop.f32.mrb[0].mxu0
        %v876 = vadd.f32 0.0, %v875
        %v877 = vpop.f32.mrb[0].mxu0
        %v878 = vpop.f32.mrb[0].mxu0
        %v879 = vadd.f32 0.0, %v878
        %v880 = vpop.f32.mrb[0].mxu0
        %881 = vmatprep.mubr.bf16.mxu0 0
        %882 = vmatmul.mubr.bf16.gmra.mrb[0].mxu0 %v466
        %v883 = vpop.f32.mrb[0].mxu0
        %v884 = vadd.f32 0.0, %v883
        %v885 = vpop.f32.mrb[0].mxu0
        %v886 = vpop.f32.mrb[0].mxu0
        %v887 = vadd.f32 0.0, %v886
        %v888 = vpop.f32.mrb[0].mxu0
        %889 = vmatprep.mubr.bf16.mxu0 0
        %890 = vmatmul.mubr.bf16.gmra.mrb[0].mxu0 %v469
        %v891 = vpop.f32.mrb[0].mxu0
        %v892 = vadd.f32 0.0, %v891
        %v893 = vpop.f32.mrb[0].mxu0
        %v894 = vpop.f32.mrb[0].mxu0
        %v895 = vadd.f32 0.0, %v894
        %v896 = vpop.f32.mrb[0].mxu0
        %897 = vmatprep.mubr.bf16.mxu0 0
        %898 = vmatmul.mubr.bf16.gmra.mrb[0].mxu0 %v472
        %v899 = vpop.f32.mrb[0].mxu0
        %v900 = vadd.f32 0.0, %v899
        %v901 = vpop.f32.mrb[0].mxu0
        %v902 = vpop.f32.mrb[0].mxu0
        %v903 = vadd.f32 0.0, %v902
        %v904 = vpop.f32.mrb[0].mxu0
        %905 = vmatprep.mubr.bf16.mxu0 0
        %906 = vmatmul.mubr.bf16.gmra.mrb[0].mxu0 %v475
        %v907 = vpop.f32.mrb[0].mxu0
        %v908 = vadd.f32 0.0, %v907
        %v909 = vpop.f32.mrb[0].mxu0
        %v910 = vpop.f32.mrb[0].mxu0
        %v911 = vadd.f32 0.0, %v910
        %v912 = vpop.f32.mrb[0].mxu0
        %913 = vmatprep.mubr.bf16.mxu0 0
        %914 = vmatmul.mubr.bf16.gmra.mrb[0].mxu0 %v478
        %v915 = vpop.f32.mrb[0].mxu0
        %v916 = vadd.f32 0.0, %v915
        %v917 = vpop.f32.mrb[0].mxu0
        %v918 = vpop.f32.mrb[0].mxu0
        %v919 = vadd.f32 0.0, %v918
        %v920 = vpop.f32.mrb[0].mxu0
        %921 = vmatprep.mubr.bf16.mxu0 0
        %922 = vmatmul.mubr.bf16.gmra.mrb[0].mxu0 %v481
        %v923 = vpop.f32.mrb[0].mxu0
        %v924 = vadd.f32 0.0, %v923
        %v925 = vpop.f32.mrb[0].mxu0
        %v926 = vpop.f32.mrb[0].mxu0
        %v927 = vadd.f32 0.0, %v926
        %v928 = vpop.f32.mrb[0].mxu0
        %929 = vmatprep.mubr.bf16.mxu0 0
        %930 = vmatmul.mubr.bf16.gmra.mrb[0].mxu0 %v484
        %v931 = vpop.f32.mrb[0].mxu0
        %v932 = vadd.f32 0.0, %v931
        %v933 = vpop.f32.mrb[0].mxu0
        %v934 = vpop.f32.mrb[0].mxu0
        %v935 = vadd.f32 0.0, %v934
        %v936 = vpop.f32.mrb[0].mxu0
        %937 = vmatprep.mubr.bf16.mxu0 0
        %938 = vmatmul.mubr.bf16.gmra.mrb[0].mxu0 %v487
        %v939 = vpop.f32.mrb[0].mxu0
        %v940 = vadd.f32 0.0, %v939
        %v941 = vpop.f32.mrb[0].mxu0
        %v942 = vpop.f32.mrb[0].mxu0
        %v943 = vadd.f32 0.0, %v942
        %v944 = vpop.f32.mrb[0].mxu0
        %945 = vmatprep.mubr.bf16.mxu0 0
        %946 = vmatmul.mubr.bf16.gmra.mrb[0].mxu0 %v490
        %v947 = vpop.f32.mrb[0].mxu0
        %v948 = vadd.f32 0.0, %v947
        %v949 = vpop.f32.mrb[0].mxu0
        %v950 = vpop.f32.mrb[0].mxu0
        %v951 = vadd.f32 0.0, %v950
        %v952 = vpop.f32.mrb[0].mxu0
        %953 = vmatprep.mubr.bf16.mxu0 0
        %954 = vmatmul.mubr.bf16.gmra.mrb[0].mxu0 %v493
        %v955 = vpop.f32.mrb[0].mxu0
        %v956 = vadd.f32 0.0, %v955
        %v957 = vpop.f32.mrb[0].mxu0
        %v958 = vpop.f32.mrb[0].mxu0
        %v959 = vadd.f32 0.0, %v958
        %v960 = vpop.f32.mrb[0].mxu0
        %961 = vmatprep.mubr.bf16.mxu0 0
        %962 = vmatmul.mubr.bf16.gmra.mrb[0].mxu0 %v496
        %v963 = vpop.f32.mrb[0].mxu0
        %v964 = vadd.f32 0.0, %v963
        %v965 = vpop.f32.mrb[0].mxu0
        %v966 = vpop.f32.mrb[0].mxu0
        %v967 = vadd.f32 0.0, %v966
        %v968 = vpop.f32.mrb[0].mxu0
        %969 = vmatprep.mubr.bf16.mxu0 0
        %970 = vmatmul.mubr.bf16.gmra.mrb[0].mxu0 %v499
        %v971 = vpop.f32.mrb[0].mxu0
        %v972 = vadd.f32 0.0, %v971
        %v973 = vpop.f32.mrb[0].mxu0
        %v974 = vpop.f32.mrb[0].mxu0
        %v975 = vadd.f32 0.0, %v974
        %v976 = vpop.f32.mrb[0].mxu0
        %977 = vmatprep.mubr.bf16.mxu0 0
        %978 = vmatmul.mubr.bf16.gmra.mrb[0].mxu0 %v502
        %v979 = vpop.f32.mrb[0].mxu0
        %v980 = vadd.f32 0.0, %v979
        %v981 = vpop.f32.mrb[0].mxu0
        %v982 = vpop.f32.mrb[0].mxu0
        %v983 = vadd.f32 0.0, %v982
        %v984 = vpop.f32.mrb[0].mxu0
        %985 = vmatprep.mubr.bf16.mxu0 0
        %986 = vmatmul.mubr.bf16.gmra.mrb[0].mxu0 %v505
        %v987 = vpop.f32.mrb[0].mxu0
        %v988 = vadd.f32 0.0, %v987
        %v989 = vpop.f32.mrb[0].mxu0
        %v990 = vpop.f32.mrb[0].mxu0
        %v991 = vadd.f32 0.0, %v990
        %v992 = vpop.f32.mrb[0].mxu0
        %993 = vmatprep.mubr.bf16.mxu0 0
        %994 = vmatmul.mubr.bf16.gmra.mrb[0].mxu0 %v508
        %v995 = vpop.f32.mrb[0].mxu0
        %v996 = vadd.f32 0.0, %v995
        %v997 = vpop.f32.mrb[0].mxu0
        %v998 = vpop.f32.mrb[0].mxu0
        %v999 = vadd.f32 0.0, %v998
        %v1000 = vpop.f32.mrb[0].mxu0
        %1001 = vmatprep.mubr.bf16.mxu0 0
        %1002 = vmatmul.mubr.bf16.gmra.mrb[0].mxu0 %v511
        %v1003 = vpop.f32.mrb[0].mxu0
        %v1004 = vadd.f32 0.0, %v1003
        %v1005 = vpop.f32.mrb[0].mxu0
        %v1006 = vpop.f32.mrb[0].mxu0
        %v1007 = vadd.f32 0.0, %v1006
        %v1008 = vpop.f32.mrb[0].mxu0
        %1009 = vmatprep.mubr.bf16.mxu0 0
        %1010 = vmatmul.mubr.bf16.gmra.mrb[0].mxu0 %v514
        %v1011 = vpop.f32.mrb[0].mxu0
        %v1012 = vadd.f32 0.0, %v1011
        %v1013 = vpop.f32.mrb[0].mxu0
        %v1014 = vpop.f32.mrb[0].mxu0
        %v1015 = vadd.f32 0.0, %v1014
        %v1016 = vpop.f32.mrb[0].mxu0
        %1017 = vmatprep.mubr.bf16.mxu0 0
        %1018 = vmatmul.mubr.bf16.gmra.mrb[0].mxu0 %v517
        %v1019 = vpop.f32.mrb[0].mxu0
        %v1020 = vadd.f32 0.0, %v1019
        %v1021 = vpop.f32.mrb[0].mxu0
        %v1022 = vpop.f32.mrb[0].mxu0
        %v1023 = vadd.f32 0.0, %v1022
        %v1024 = vpop.f32.mrb[0].mxu0
        %1025 = vmatprep.mubr.bf16.mxu0 0
        %1026 = vmatmul.mubr.bf16.gmra.mrb[0].mxu0 %v520
        %v1027 = vpop.f32.mrb[0].mxu0
        %v1028 = vadd.f32 0.0, %v1027
        %v1029 = vpop.f32.mrb[0].mxu0
        %v1030 = vpop.f32.mrb[0].mxu0
        %v1031 = vadd.f32 0.0, %v1030
        %v1032 = vpop.f32.mrb[0].mxu0
        %1033 = vmatprep.mubr.bf16.mxu0 0
        %1034 = vmatmul.mubr.bf16.gmra.mrb[0].mxu0 %v523
        %v1035 = vpop.f32.mrb[0].mxu0
        %v1036 = vadd.f32 0.0, %v1035
        %v1037 = vpop.f32.mrb[0].mxu0
        %v1038 = vpop.f32.mrb[0].mxu0
        %v1039 = vadd.f32 0.0, %v1038
        %v1040 = vpop.f32.mrb[0].mxu0
        %1041 = vmatprep.mubr.bf16.mxu0 0
        %1042 = vmatmul.mubr.bf16.gmra.mrb[0].mxu0 %v526
        %v1043 = vpop.f32.mrb[0].mxu0
        %v1044 = vadd.f32 0.0, %v1043
        %v1045 = vpop.f32.mrb[0].mxu0
        %v1046 = vpop.f32.mrb[0].mxu0
        %v1047 = vadd.f32 0.0, %v1046
        %v1048 = vpop.f32.mrb[0].mxu0
        %1049 = vmatprep.mubr.bf16.mxu0 0
        %1050 = vmatmul.mubr.bf16.gmra.mrb[0].mxu0 %v529
        %v1051 = vpop.f32.mrb[0].mxu0
        %v1052 = vadd.f32 0.0, %v1051
        %v1053 = vpop.f32.mrb[0].mxu0
        %v1054 = vpop.f32.mrb[0].mxu0
        %v1055 = vadd.f32 0.0, %v1054
        %v1056 = vpop.f32.mrb[0].mxu0
        %1057 = vmatprep.mubr.bf16.mxu0 0
        %1058 = vmatmul.mubr.bf16.gmra.mrb[0].mxu0 %v532
        %v1059 = vpop.f32.mrb[0].mxu0
        %v1060 = vadd.f32 0.0, %v1059
        %v1061 = vpop.f32.mrb[0].mxu0
        %v1062 = vpop.f32.mrb[0].mxu0
        %v1063 = vadd.f32 0.0, %v1062
        %v1064 = vpop.f32.mrb[0].mxu0
        %1065 = vmatprep.mubr.bf16.mxu0 0
        %1066 = vmatmul.mubr.bf16.gmra.mrb[0].mxu0 %v535
        %v1067 = vpop.f32.mrb[0].mxu0
        %v1068 = vadd.f32 0.0, %v1067
        %v1069 = vpop.f32.mrb[0].mxu0
        %v1070 = vpop.f32.mrb[0].mxu0
        %v1071 = vadd.f32 0.0, %v1070
        %v1072 = vpop.f32.mrb[0].mxu0
        %1073 = vmatprep.mubr.bf16.mxu0 0
        %1074 = vmatmul.mubr.bf16.gmra.mrb[0].mxu0 %v538
        %v1075 = vpop.f32.mrb[0].mxu0
        %v1076 = vadd.f32 0.0, %v1075
        %v1077 = vpop.f32.mrb[0].mxu0
        %v1078 = vpop.f32.mrb[0].mxu0
        %v1079 = vadd.f32 0.0, %v1078
        %v1080 = vpop.f32.mrb[0].mxu0
        %1081 = vmatprep.mubr.bf16.mxu0 0
        %1082 = vmatmul.mubr.bf16.gmra.mrb[0].mxu0 %v541
        %v1083 = vpop.f32.mrb[0].mxu0
        %v1084 = vadd.f32 0.0, %v1083
        %v1085 = vpop.f32.mrb[0].mxu0
        %v1086 = vpop.f32.mrb[0].mxu0
        %v1087 = vadd.f32 0.0, %v1086
        %v1088 = vpop.f32.mrb[0].mxu0
        %1089 = vmatprep.mubr.bf16.mxu0 0
        %1090 = vmatmul.mubr.bf16.gmra.mrb[0].mxu0 %v544
        %v1091 = vpop.f32.mrb[0].mxu0
        %v1092 = vadd.f32 0.0, %v1091
        %v1093 = vpop.f32.mrb[0].mxu0
        %v1094 = vpop.f32.mrb[0].mxu0
        %v1095 = vadd.f32 0.0, %v1094
        %v1096 = vpop.f32.mrb[0].mxu0
        %1097 = vdwg.mxu0
        %1098 = vst [vmem:[%s137] sm:$0xff] %v588
        %1099 = vst [vmem:[%s137 + $0x8] sm:$0xff] %v591
        %1100 = vst [vmem:[%s137 + $0x10] sm:$0xff] %v596
        %1101 = vst [vmem:[%s137 + $0x18] sm:$0xff] %v599
        %1102 = vst [vmem:[%s137 + $0x20] sm:$0xff] %v604
        %1103 = vst [vmem:[%s137 + $0x28] sm:$0xff] %v607
        %1104 = vst [vmem:[%s137 + $0x30] sm:$0xff] %v612
        %1105 = vst [vmem:[%s137 + $0x38] sm:$0xff] %v615
        %1106 = vst [vmem:[%s137 + $0x40] sm:$0xff] %v620
        %1107 = vst [vmem:[%s137 + $0x48] sm:$0xff] %v623
        %1108 = vst [vmem:[%s137 + $0x50] sm:$0xff] %v628
        %1109 = vst [vmem:[%s137 + $0x58] sm:$0xff] %v631
        %1110 = vst [vmem:[%s137 + $0x60] sm:$0xff] %v636
        %1111 = vst [vmem:[%s137 + $0x68] sm:$0xff] %v639
        %1112 = vst [vmem:[%s137 + $0x70] sm:$0xff] %v644
        %1113 = vst [vmem:[%s137 + $0x78] sm:$0xff] %v647
        %1114 = vst [vmem:[%s137 + $0x80] sm:$0xff] %v652
        %1115 = vst [vmem:[%s137 + $0x88] sm:$0xff] %v655
        %1116 = vst [vmem:[%s137 + $0x90] sm:$0xff] %v660
        %1117 = vst [vmem:[%s137 + $0x98] sm:$0xff] %v663
        %1118 = vst [vmem:[%s137 + $0xa0] sm:$0xff] %v668
        %1119 = vst [vmem:[%s137 + $0xa8] sm:$0xff] %v671
        %1120 = vst [vmem:[%s137 + $0xb0] sm:$0xff] %v676
        %1121 = vst [vmem:[%s137 + $0xb8] sm:$0xff] %v679
        %1122 = vst [vmem:[%s137 + $0xc0] sm:$0xff] %v684
        %1123 = vst [vmem:[%s137 + $0xc8] sm:$0xff] %v687
        %1124 = vst [vmem:[%s137 + $0xd0] sm:$0xff] %v692
        %1125 = vst [vmem:[%s137 + $0xd8] sm:$0xff] %v695
        %1126 = vst [vmem:[%s137 + $0xe0] sm:$0xff] %v700
        %1127 = vst [vmem:[%s137 + $0xe8] sm:$0xff] %v703
        %1128 = vst [vmem:[%s137 + $0xf0] sm:$0xff] %v708
        %1129 = vst [vmem:[%s137 + $0xf8] sm:$0xff] %v711
        %1130 = vst [vmem:[%s137 + $0x100] sm:$0xff] %v716
        %1131 = vst [vmem:[%s137 + $0x108] sm:$0xff] %v719
        %1132 = vst [vmem:[%s137 + $0x110] sm:$0xff] %v724
        %1133 = vst [vmem:[%s137 + $0x118] sm:$0xff] %v727
        %1134 = vst [vmem:[%s137 + $0x120] sm:$0xff] %v732
        %1135 = vst [vmem:[%s137 + $0x128] sm:$0xff] %v735
        %1136 = vst [vmem:[%s137 + $0x130] sm:$0xff] %v740
        %1137 = vst [vmem:[%s137 + $0x138] sm:$0xff] %v743
        %1138 = vst [vmem:[%s137 + $0x140] sm:$0xff] %v748
        %1139 = vst [vmem:[%s137 + $0x148] sm:$0xff] %v751
        %1140 = vst [vmem:[%s137 + $0x150] sm:$0xff] %v756
        %1141 = vst [vmem:[%s137 + $0x158] sm:$0xff] %v759
        %1142 = vst [vmem:[%s137 + $0x160] sm:$0xff] %v764
        %1143 = vst [vmem:[%s137 + $0x168] sm:$0xff] %v767
        %1144 = vst [vmem:[%s137 + $0x170] sm:$0xff] %v772
        %1145 = vst [vmem:[%s137 + $0x178] sm:$0xff] %v775
        %1146 = vst [vmem:[%s137 + $0x180] sm:$0xff] %v780
        %1147 = vst [vmem:[%s137 + $0x188] sm:$0xff] %v783
        %1148 = vst [vmem:[%s137 + $0x190] sm:$0xff] %v788
        %1149 = vst [vmem:[%s137 + $0x198] sm:$0xff] %v791
        %1150 = vst [vmem:[%s137 + $0x1a0] sm:$0xff] %v796
        %1151 = vst [vmem:[%s137 + $0x1a8] sm:$0xff] %v799
        %1152 = vst [vmem:[%s137 + $0x1b0] sm:$0xff] %v804
        %1153 = vst [vmem:[%s137 + $0x1b8] sm:$0xff] %v807
        %1154 = vst [vmem:[%s137 + $0x1c0] sm:$0xff] %v812
        %1155 = vst [vmem:[%s137 + $0x1c8] sm:$0xff] %v815
        %1156 = vst [vmem:[%s137 + $0x1d0] sm:$0xff] %v820
        %1157 = vst [vmem:[%s137 + $0x1d8] sm:$0xff] %v823
        %1158 = vst [vmem:[%s137 + $0x1e0] sm:$0xff] %v828
        %1159 = vst [vmem:[%s137 + $0x1e8] sm:$0xff] %v831
        %1160 = vst [vmem:[%s137 + $0x1f0] sm:$0xff] %v836
        %1161 = vst [vmem:[%s137 + $0x1f8] sm:$0xff] %v839
        %1162 = vst [vmem:[%s137 + $0x200] sm:$0xff] %v844
        %1163 = vst [vmem:[%s137 + $0x208] sm:$0xff] %v847
        %1164 = vst [vmem:[%s137 + $0x210] sm:$0xff] %v852
        %1165 = vst [vmem:[%s137 + $0x218] sm:$0xff] %v855
        %1166 = vst [vmem:[%s137 + $0x220] sm:$0xff] %v860
        %1167 = vst [vmem:[%s137 + $0x228] sm:$0xff] %v863
        %1168 = vst [vmem:[%s137 + $0x230] sm:$0xff] %v868
        %1169 = vst [vmem:[%s137 + $0x238] sm:$0xff] %v871
        %1170 = vst [vmem:[%s137 + $0x240] sm:$0xff] %v876
        %1171 = vst [vmem:[%s137 + $0x248] sm:$0xff] %v879
        %1172 = vst [vmem:[%s137 + $0x250] sm:$0xff] %v884
        %1173 = vst [vmem:[%s137 + $0x258] sm:$0xff] %v887
        %1174 = vst [vmem:[%s137 + $0x260] sm:$0xff] %v892
        %1175 = vst [vmem:[%s137 + $0x268] sm:$0xff] %v895
        %1176 = vst [vmem:[%s137 + $0x270] sm:$0xff] %v900
        %1177 = vst [vmem:[%s137 + $0x278] sm:$0xff] %v903
        %1178 = vst [vmem:[%s137 + $0x280] sm:$0xff] %v908
        %1179 = vst [vmem:[%s137 + $0x288] sm:$0xff] %v911
        %1180 = vst [vmem:[%s137 + $0x290] sm:$0xff] %v916
        %1181 = vst [vmem:[%s137 + $0x298] sm:$0xff] %v919
        %1182 = vst [vmem:[%s137 + $0x2a0] sm:$0xff] %v924
        %1183 = vst [vmem:[%s137 + $0x2a8] sm:$0xff] %v927
        %1184 = vst [vmem:[%s137 + $0x2b0] sm:$0xff] %v932
        %1185 = vst [vmem:[%s137 + $0x2b8] sm:$0xff] %v935
        %1186 = vst [vmem:[%s137 + $0x2c0] sm:$0xff] %v940
        %1187 = vst [vmem:[%s137 + $0x2c8] sm:$0xff] %v943
        %1188 = vst [vmem:[%s137 + $0x2d0] sm:$0xff] %v948
        %1189 = vst [vmem:[%s137 + $0x2d8] sm:$0xff] %v951
        %1190 = vst [vmem:[%s137 + $0x2e0] sm:$0xff] %v956
        %1191 = vst [vmem:[%s137 + $0x2e8] sm:$0xff] %v959
        %1192 = vst [vmem:[%s137 + $0x2f0] sm:$0xff] %v964
        %1193 = vst [vmem:[%s137 + $0x2f8] sm:$0xff] %v967
        %1194 = vst [vmem:[%s137 + $0x300] sm:$0xff] %v972
        %1195 = vst [vmem:[%s137 + $0x308] sm:$0xff] %v975
        %1196 = vst [vmem:[%s137 + $0x310] sm:$0xff] %v980
        %1197 = vst [vmem:[%s137 + $0x318] sm:$0xff] %v983
        %1198 = vst [vmem:[%s137 + $0x320] sm:$0xff] %v988
        %1199 = vst [vmem:[%s137 + $0x328] sm:$0xff] %v991
        %1200 = vst [vmem:[%s137 + $0x330] sm:$0xff] %v996
        %1201 = vst [vmem:[%s137 + $0x338] sm:$0xff] %v999
        %1202 = vst [vmem:[%s137 + $0x340] sm:$0xff] %v1004
        %1203 = vst [vmem:[%s137 + $0x348] sm:$0xff] %v1007
        %1204 = vst [vmem:[%s137 + $0x350] sm:$0xff] %v1012
        %1205 = vst [vmem:[%s137 + $0x358] sm:$0xff] %v1015
        %1206 = vst [vmem:[%s137 + $0x360] sm:$0xff] %v1020
        %1207 = vst [vmem:[%s137 + $0x368] sm:$0xff] %v1023
        %1208 = vst [vmem:[%s137 + $0x370] sm:$0xff] %v1028
        %1209 = vst [vmem:[%s137 + $0x378] sm:$0xff] %v1031
        %1210 = vst [vmem:[%s137 + $0x380] sm:$0xff] %v1036
        %1211 = vst [vmem:[%s137 + $0x388] sm:$0xff] %v1039
        %1212 = vst [vmem:[%s137 + $0x390] sm:$0xff] %v1044
        %1213 = vst [vmem:[%s137 + $0x398] sm:$0xff] %v1047
        %1214 = vst [vmem:[%s137 + $0x3a0] sm:$0xff] %v1052
        %1215 = vst [vmem:[%s137 + $0x3a8] sm:$0xff] %v1055
        %1216 = vst [vmem:[%s137 + $0x3b0] sm:$0xff] %v1060
        %1217 = vst [vmem:[%s137 + $0x3b8] sm:$0xff] %v1063
        %1218 = vst [vmem:[%s137 + $0x3c0] sm:$0xff] %v1068
        %1219 = vst [vmem:[%s137 + $0x3c8] sm:$0xff] %v1071
        %1220 = vst [vmem:[%s137 + $0x3d0] sm:$0xff] %v1076
        %1221 = vst [vmem:[%s137 + $0x3d8] sm:$0xff] %v1079
        %1222 = vst [vmem:[%s137 + $0x3e0] sm:$0xff] %v1084
        %1223 = vst [vmem:[%s137 + $0x3e8] sm:$0xff] %v1087
        %1224 = vst [vmem:[%s137 + $0x3f0] sm:$0xff] %v1092
        %1225 = vst [vmem:[%s137 + $0x3f8] sm:$0xff] %v1095
        %s1226 = sand.u32 %s71, 1
        %s1227 = scalar_lea.sflag [#allocation3], %s1226
        %s1228 = sand.u32 %s71, 1
        %s1229 = smul.addr %s1228, 1024
        %s1230 = scalar_lea.vmem [#allocation2], %s1229
        // Predicated region
        $region29: #{tpu_custom_call.1} parent=27 // pred_check
          %p1231 = pneg %p81
        $region30: #{tpu_custom_call.1} parent=27 // pred_check_branch
          %1233 = sbr.rel (%p1231) target = $region32
        $region31: #{tpu_custom_call.1} parent=27 // pred_region
          %s1234 = smul.u32 128, %s16
          %s1236 = ssub.s32 16384, 16384
          %1237 = vsyncadd %s1227, %s1236
          %s1238 = smul.addr %s1234, 128
          %s1239 = scalar_lea.hbm %s2, %s1238
          %s1240 = sshll.u32 %s1230, 4
          %s1241 = int_to_ptr.vmem [resolvable:$true] %s1240
          %1246 = dma.vmem_to_hbm [thread:$0]  %s1241, 16384, %s1239, %s1227, 128, 128, 8
        $region32: #{tpu_custom_call.1} parent=27 // pred_fallthru
          _
      $region28: #{tpu_custom_call.1} parent=5 // pred_fallthru
        _
      %p1247 = scmp.le.s32.totalorder 2, %s11
      // Predicated region
      $region33: #{tpu_custom_call.1} parent=5 // pred_check
        %p1248 = pneg %p1247
      $region34: #{tpu_custom_call.1} parent=5 // pred_check_branch
        %1250 = sbr.rel (%p1248) target = $region36
      $region35: #{tpu_custom_call.1} parent=5 // pred_region
        %s1251 = ssub.s32 %s11, 2
        // Predicated region
        $region37: #{tpu_custom_call.1} parent=35 // pred_check
          %p1252 = pneg %p87
        $region38: #{tpu_custom_call.1} parent=35 // pred_check_branch
          %1254 = sbr.rel (%p1252) target = $region40
        $region39: #{tpu_custom_call.1} parent=35 // pred_region
          %s1255 = sand.u32 %s72, 1
          %s1256 = scalar_lea.sflag [#allocation3], %s1255
          %s1257 = sand.u32 %s72, 1
          %s1258 = smul.addr %s1257, 1024
          %s1259 = scalar_lea.vmem [#allocation2], %s1258
          %1260 = dma.done %s1256, 16384
        $region40: #{tpu_custom_call.1} parent=35 // pred_fallthru
          _
      $region36: #{tpu_custom_call.1} parent=5 // pred_fallthru
        _
    $region6: #{tpu_custom_call.1} parent=1 // loop_footer
      %s15 = sadd.s32 1, %s11
    $region7: #{tpu_custom_call.1} parent=1 // loop_footer_branch
      %10 = sbr.rel target = $region3
    $region8: #{tpu_custom_call.1} parent=1 // loop_exit
      _
    %1261 = vsyncpa [#allocation3], 1
    %s1262 = scalar_lea.sflag [#allocation3], 1
    %1263 = vsyncpa %s1262, 1

</llo_original>
